<compile_context>
chip_gen: v7x
topology: tpu7x:2x2x1
jax: 0.10.0
libtpu: 0.0.40
codegen_flags: <defaults>
</compile_context>

<pallas_src>
import functools

import jax
import jax.numpy as jnp
from jax import lax
from jax.experimental import pallas as pl
from jax.experimental.pallas import tpu as pltpu

LANE = 128
MAX_BLOCK_ROWS = 2048  # 2048 x 128 x 4 B = 1 MiB per f32 input buffer


def _tanh_absdiff(x, t, a, b):
    """|tanh(x*a - b) - tanh(t*a - b)|  ==  2 * |sigmoid(x) - sigmoid(t)|.

    sigmoid((v-c)/w) = 0.5 * (1 + tanh((v-c)/(2w))); with a = 1/(2w), b = c*a.
    Callers apply the 0.5.
    """
    x = x.astype(jnp.float32)
    t = t.astype(jnp.float32)
    return jnp.abs(jnp.tanh(x * a - b) - jnp.tanh(t * a - b))


def _elementwise_kernel(x_ref, t_ref, o_ref, *, a, b):
    l = 0.5 * _tanh_absdiff(x_ref[...], t_ref[...], a, b)
    o_ref[...] = l.astype(o_ref.dtype)


def _partial_sum_kernel(x_ref, t_ref, o_ref, *, a, b, rows, block_rows, part_rows):
    # 2*loss; the 0.5 is applied once to the final scalar in the wrapper.
    l = _tanh_absdiff(x_ref[...], t_ref[...], a, b)
    if rows % block_rows != 0:
        # Ragged last grid block: zero contributions from out-of-bounds rows
        # (their VMEM contents are unspecified).
        row_ids = (pl.program_id(0) * block_rows
                   + lax.broadcasted_iota(jnp.int32, l.shape, 0))
        l = jnp.where(row_ids < rows, l, 0.0)
    if block_rows > part_rows:
        # Fold groups of 8 sublanes on top of each other: pure VPU vreg adds,
        # no XLU cross-lane/sublane reduce, lane-dense (8,128) unmasked store.
        l = l.reshape(block_rows // part_rows, part_rows, LANE).sum(axis=0)
    o_ref[...] = l


def _pick_block_rows(rows):
    if rows <= 8:
        return rows  # full-dim block (allowed even when < 8 sublanes)
    # Multiple of 8, capped at MAX_BLOCK_ROWS, and small enough that the grid
    # has >= 2 blocks so both v7x TensorCores get work ("parallel" semantics).
    half = -(-rows // 2)
    return max(8, min(MAX_BLOCK_ROWS, (half // 8) * 8))


def cross_sigmoid_loss(inp, target, critical=0.0, width=0.33, reduction="mean"):
    assert inp.shape == target.shape, "input/target must have the same shape"
    if reduction not in ("none", "sum", "mean"):
        raise NotImplementedError("reduction should be either 'none', 'sum', or 'mean'.")

    orig_shape = inp.shape
    orig_dtype = inp.dtype
    n = inp.size
    itemsize = jnp.dtype(orig_dtype).itemsize
    a = 0.5 / float(width)        # 1 / (2w)
    b = float(critical) * a       # c / (2w)

    x_flat = jnp.ravel(inp)
    t_flat = jnp.ravel(target)
    padded_n = -(-n // LANE) * LANE
    if padded_n != n:
        # TODO(synk): a fully pad-free path for n % 128 != 0 would need an
        # in-kernel lane mask; this small pad (copy) only triggers for awkward sizes.
        pad = padded_n - n
        x_flat = jnp.pad(x_flat, (0, pad))
        t_flat = jnp.pad(t_flat, (0, pad))  # |sig(0)-sig(0)| = 0 -> no effect on sum/mean

    rows = padded_n // LANE
    x2 = x_flat.reshape(rows, LANE)
    t2 = t_flat.reshape(rows, LANE)

    block_rows = _pick_block_rows(rows)
    num_blocks = pl.cdiv(rows, block_rows)  # ragged last block handled in-kernel
    grid = (num_blocks,)

    in_specs = [
        pl.BlockSpec((block_rows, LANE), lambda i: (i, 0)),
        pl.BlockSpec((block_rows, LANE), lambda i: (i, 0)),
    ]
    cparams = pltpu.CompilerParams(
        dimension_semantics=("parallel",),
        vmem_limit_bytes=32 * 1024 * 1024,
    )

    if reduction == "none":
        out2 = pl.pallas_call(
            functools.partial(_elementwise_kernel, a=a, b=b),
            out_shape=jax.ShapeDtypeStruct((rows, LANE), orig_dtype),
            grid_spec=pltpu.PrefetchScalarGridSpec(
                num_scalar_prefetch=0,
                grid=grid,
                in_specs=in_specs,
                out_specs=pl.BlockSpec((block_rows, LANE), lambda i: (i, 0)),
            ),
            compiler_params=cparams,
            cost_estimate=pl.CostEstimate(
                flops=6 * n, transcendentals=2 * n,
                bytes_accessed=3 * n * itemsize),
        )(x2, t2)
        if padded_n != n:
            return out2.reshape(-1)[:n].reshape(orig_shape)
        return out2.reshape(orig_shape)

    # sum / mean: one lane-dense (part_rows, 128) f32 partial per block,
    # reduced to a scalar in the wrapper (negligible).
    part_rows = 8 if block_rows % 8 == 0 else block_rows
    partials = pl.pallas_call(
        functools.partial(_partial_sum_kernel, a=a, b=b, rows=rows,
                          block_rows=block_rows, part_rows=part_rows),
        out_shape=jax.ShapeDtypeStruct((num_blocks * part_rows, LANE), jnp.float32),
        grid_spec=pltpu.PrefetchScalarGridSpec(
            num_scalar_prefetch=0,
            grid=grid,
            in_specs=in_specs,
            out_specs=pl.BlockSpec((part_rows, LANE), lambda i: (i, 0)),
        ),
        compiler_params=cparams,
        cost_estimate=pl.CostEstimate(
            flops=6 * n, transcendentals=2 * n,
            bytes_accessed=2 * n * itemsize + num_blocks * part_rows * LANE * 4),
    )(x2, t2)

    total = 0.5 * jnp.sum(partials)
    if reduction == "sum":
        return total
    return total / n  # mean


def _reference(inp, target, critical=0.0, width=0.33, reduction="mean"):
    sig = lambda v: 1.0 / (1.0 + jnp.exp(-(v - critical) / width))
    l = jnp.abs(sig(inp) - sig(target))
    if reduction == "none":
        return l
    if reduction == "sum":
        return jnp.sum(l)
    return jnp.mean(l)


if __name__ == "__main__":
    key = jax.random.PRNGKey(0)
    k1, k2 = jax.random.split(key)
    # NCHW, like the PyTorch convention: batch=2, channels=4, 16x16 spatial.
    x = jax.random.normal(k1, (2, 4, 16, 16), dtype=jnp.float32)
    t = jax.random.normal(k2, (2, 4, 16, 16), dtype=jnp.float32)

    out_mean = jax.block_until_ready(cross_sigmoid_loss(x, t, reduction="mean"))
    out_sum = jax.block_until_ready(cross_sigmoid_loss(x, t, reduction="sum"))
    out_none = jax.block_until_ready(cross_sigmoid_loss(x, t, reduction="none"))

    ref_mean = _reference(x, t, reduction="mean")
    ref_sum = _reference(x, t, reduction="sum")
    ref_none = _reference(x, t, reduction="none")

    assert out_none.shape == x.shape and out_none.dtype == x.dtype
    assert jnp.allclose(out_mean, ref_mean, rtol=1e-4, atol=1e-4)
    assert jnp.allclose(out_sum, ref_sum, rtol=1e-4, atol=1e-3)
    assert jnp.allclose(out_none, ref_none, rtol=1e-4, atol=1e-4)

    print("KERNEL_OK")
</pallas_src>

<mosaic_0001>
module attributes {stable_mosaic.version = 11 : i64} {
  func.func @_partial_sum_kernel(%arg0: i32, %arg1: memref<8x128xf32, #tpu.memory_space<vmem>>, %arg2: memref<8x128xf32, #tpu.memory_space<vmem>>, %arg3: memref<8x128xf32, #tpu.memory_space<vmem>>) attributes {dimension_semantics = [#tpu.dimension_semantics<parallel>], iteration_bounds = array<i64: 2>, scalar_prefetch = 0 : i64, scratch_operands = 0 : i64, tpu.core_type = #tpu.core_type<tc>, window_params = [{transform_indices = @transform_0, window_bounds = array<i64: 8, 128>}, {transform_indices = @transform_1, window_bounds = array<i64: 8, 128>}, {transform_indices = @transform_2, window_bounds = array<i64: 8, 128>}]} {
    %c0 = arith.constant 0 : index
    %c0_0 = arith.constant 0 : index
    %0 = vector.load %arg1[%c0, %c0_0] : memref<8x128xf32, #tpu.memory_space<vmem>>, vector<8x128xf32>
    %c0_1 = arith.constant 0 : index
    %c0_2 = arith.constant 0 : index
    %1 = vector.load %arg2[%c0_1, %c0_2] : memref<8x128xf32, #tpu.memory_space<vmem>>, vector<8x128xf32>
    %cst = arith.constant 1.5151515 : f32
    %2 = vector.broadcast %cst : f32 to vector<8x128xf32>
    %3 = arith.mulf %0, %2 : vector<8x128xf32>
    %cst_3 = arith.constant 0.000000e+00 : f32
    %4 = vector.broadcast %cst_3 : f32 to vector<8x128xf32>
    %5 = arith.subf %3, %4 : vector<8x128xf32>
    %6 = math.tanh %5 : vector<8x128xf32>
    %cst_4 = arith.constant 1.5151515 : f32
    %7 = vector.broadcast %cst_4 : f32 to vector<8x128xf32>
    %8 = arith.mulf %1, %7 : vector<8x128xf32>
    %cst_5 = arith.constant 0.000000e+00 : f32
    %9 = vector.broadcast %cst_5 : f32 to vector<8x128xf32>
    %10 = arith.subf %8, %9 : vector<8x128xf32>
    %11 = math.tanh %10 : vector<8x128xf32>
    %12 = arith.subf %6, %11 : vector<8x128xf32>
    %13 = math.absf %12 : vector<8x128xf32>
    %c0_6 = arith.constant 0 : index
    %c0_7 = arith.constant 0 : index
    %14 = vector.load %arg3[%c0_6, %c0_7] : memref<8x128xf32, #tpu.memory_space<vmem>>, vector<8x128xf32>
    tpu.vector_store %arg3[%c0_6, %c0_7], %13 {strides = array<i32>} : memref<8x128xf32, #tpu.memory_space<vmem>>, vector<8x128xf32>,
    return
  }
  func.func @transform_0(%arg0: i32) -> (i32, i32) {
    %c0_i32 = arith.constant 0 : i32
    %c0_i32_0 = arith.constant 0 : i32
    return %arg0, %c0_i32 : i32, i32
  }
  func.func @transform_1(%arg0: i32) -> (i32, i32) {
    %c0_i32 = arith.constant 0 : i32
    %c0_i32_0 = arith.constant 0 : i32
    return %arg0, %c0_i32 : i32, i32
  }
  func.func @transform_2(%arg0: i32) -> (i32, i32) {
    %c0_i32 = arith.constant 0 : i32
    %c0_i32_0 = arith.constant 0 : i32
    return %arg0, %c0_i32 : i32, i32
  }
}

</mosaic_0001>

<llo_original>
// kernel: tpu_custom_call.1
$region0: #{tpu_custom_call.1}
  #allocation0 [shape = 'u32[]', space=smem, size = 0x4, offset = 0x4, fixed_abs, tag = 'smem constant byte address 0x4 - core index']
  #allocation1 [shape = 'u32[144,128]{1,0:T(1,128)}', space=vmem, size = 0x12000, scoped, tag = 'internal scratch']
  %s0 = inlined_call_operand.hbm [shape: f32[16,128], index: 0, kind: input, shape index: {}]
  %s1 = inlined_call_operand.hbm [shape: f32[16,128], index: 1, kind: input, shape index: {}]
  %s2 = inlined_call_operand.hbm [shape: f32[16,128], index: 2, kind: output, shape index: {}]
  %s3 = sld [smem:[#allocation0]]
  $region49: #{tpu_custom_call.1} parent=0
    _
  %s5 = ssub.s32 1, %s3
  %s6 = scalar_select 0, %s5, %s3
  $region1: #{tpu_custom_call.1} parent=0
    #allocation2 [shape = 'u8[8192]{0}', space=vmem, size = 0x2000, scoped, tag = 'input window, operand 0']
    #allocation3 [shape = 's32[2]{0}', space=sflag, size = 0x8, scoped, tag = 'scoped memory for tpu_custom_call.1']
    #allocation4 [shape = 's32[2]{0}', space=sflag, size = 0x8, scoped, tag = 'scoped memory for tpu_custom_call.1']
    #allocation5 [shape = 'u8[8192]{0}', space=vmem, size = 0x2000, scoped, tag = 'input window, operand 1']
    #allocation6 [shape = 's32[2]{0}', space=sflag, size = 0x8, scoped, tag = 'scoped memory for tpu_custom_call.1']
    #allocation7 [shape = 'u8[8192]{0}', space=vmem, size = 0x2000, scoped, tag = 'output window, operand 0']
    %7 = vsyncpa [#allocation3], 0
    %s8 = scalar_lea.sflag [#allocation3], 1
    %9 = vsyncpa %s8, 0
    %10 = vsyncpa [#allocation6], 0
    %s11 = scalar_lea.sflag [#allocation6], 1
    %12 = vsyncpa %s11, 0
    %13 = vsyncpa [#allocation4], 0
    %s14 = scalar_lea.sflag [#allocation4], 1
    %15 = vsyncpa %s14, 0
    loop: start=0, step=1, limit=4
    $region2: #{tpu_custom_call.1} parent=1 // loop_pre_header
      _
    $region3: #{tpu_custom_call.1} parent=1 // loop_header
      %s17 = sphi 0, %s21
      %p18 = scmp.ge.s32.totalorder %s17, 4
      %s27 = sphi 0, %s29
      %s30 = sphi 0, %s27
      %s31 = sphi 0, %s30
      %s47 = sphi 0, %s31
      %s53 = sphi 0, %s55
      %s56 = sphi 0, %s53
      %s57 = sphi 0, %s56
      %s73 = sphi 0, %s57
      %s79 = sphi 0, %s81
      %s82 = sphi 0, %s79
      %s83 = sphi 0, %s82
      %s99 = sphi 0, %s83
    $region4: #{tpu_custom_call.1} parent=1 // loop_header_branch
      %20 = sbr.rel (%p18) target = $region8
    $region5: #{tpu_custom_call.1} parent=1 // loop_body
      %s22 = ssub.s32 %s17, 1
      %s23 = ssub.s32 %s17, 2
      %s24 = sadd.s32 %s17, 1
      %s25 = ssub.s32 %s17, %s24
      %p26 = scmp.eq.s32.totalorder %s25, 0
      %s28 = sadd.s32 %s27, 1
      %s29 = scalar_select %p26, %s27, %s28
      %p32 = pneg %p26
      %p33 = scmp.eq.s32.totalorder %s17, 1
      %p34 = por %p32, %p33
      %p35 = scmp.ne.s32.totalorder %s27, %s30
      %p36 = scmp.eq.s32.totalorder %s17, 0
      %p37 = por %p35, %p36
      %p38 = scmp.ne.s32.totalorder %s27, %s30
      %p39 = scmp.eq.s32.totalorder %s22, 1
      %p40 = por %p38, %p39
      %p41 = scmp.ne.s32.totalorder %s30, %s31
      %p42 = scmp.eq.s32.totalorder %s22, 0
      %p43 = por %p41, %p42
      %p44 = scmp.ne.s32.totalorder %s30, %s31
      %p45 = scmp.eq.s32.totalorder %s23, 1
      %p46 = por %p44, %p45
      %p48 = scmp.ne.s32.totalorder %s31, %s47
      %p49 = scmp.eq.s32.totalorder %s23, 0
      %p50 = por %p48, %p49
      %s51 = ssub.s32 %s17, %s24
      %p52 = scmp.eq.s32.totalorder %s51, 0
      %s54 = sadd.s32 %s53, 1
      %s55 = scalar_select %p52, %s53, %s54
      %p58 = pneg %p52
      %p59 = scmp.eq.s32.totalorder %s17, 1
      %p60 = por %p58, %p59
      %p61 = scmp.ne.s32.totalorder %s53, %s56
      %p62 = scmp.eq.s32.totalorder %s17, 0
      %p63 = por %p61, %p62
      %p64 = scmp.ne.s32.totalorder %s53, %s56
      %p65 = scmp.eq.s32.totalorder %s22, 1
      %p66 = por %p64, %p65
      %p67 = scmp.ne.s32.totalorder %s56, %s57
      %p68 = scmp.eq.s32.totalorder %s22, 0
      %p69 = por %p67, %p68
      %p70 = scmp.ne.s32.totalorder %s56, %s57
      %p71 = scmp.eq.s32.totalorder %s23, 1
      %p72 = por %p70, %p71
      %p74 = scmp.ne.s32.totalorder %s57, %s73
      %p75 = scmp.eq.s32.totalorder %s23, 0
      %p76 = por %p74, %p75
      %s77 = ssub.s32 %s17, %s24
      %p78 = scmp.eq.s32.totalorder %s77, 0
      %s80 = sadd.s32 %s79, 1
      %s81 = scalar_select %p78, %s79, %s80
      %p84 = pneg %p78
      %p85 = scmp.eq.s32.totalorder %s17, 1
      %p86 = por %p84, %p85
      %p87 = scmp.ne.s32.totalorder %s79, %s82
      %p88 = scmp.eq.s32.totalorder %s17, 0
      %p89 = por %p87, %p88
      %p90 = scmp.ne.s32.totalorder %s79, %s82
      %p91 = scmp.eq.s32.totalorder %s22, 1
      %p92 = por %p90, %p91
      %p93 = scmp.ne.s32.totalorder %s82, %s83
      %p94 = scmp.eq.s32.totalorder %s22, 0
      %p95 = por %p93, %p94
      %p96 = scmp.ne.s32.totalorder %s82, %s83
      %p97 = scmp.eq.s32.totalorder %s23, 1
      %p98 = por %p96, %p97
      %p100 = scmp.ne.s32.totalorder %s83, %s99
      %p101 = scmp.eq.s32.totalorder %s23, 0
      %p102 = por %p100, %p101
      %p103 = scmp.le.s32.totalorder 1, %s17
      %p104 = scmp.lt.s32.totalorder %s17, 3
      %p105 = pnand %p103, %p104
      %p106 = pneg %p105
      // Predicated region
      $region9: #{tpu_custom_call.1} parent=5 // pred_check
        _
      $region10: #{tpu_custom_call.1} parent=5 // pred_check_branch
        %108 = sbr.rel (%p105) target = $region12
      $region11: #{tpu_custom_call.1} parent=5 // pred_region
        %s109 = ssub.s32 %s17, 1
      $region12: #{tpu_custom_call.1} parent=5 // pred_fallthru
        _
      %p110 = scmp.lt.s32.totalorder %s17, 2
      // Predicated region
      $region13: #{tpu_custom_call.1} parent=5 // pred_check
        %p111 = pneg %p110
      $region14: #{tpu_custom_call.1} parent=5 // pred_check_branch
        %113 = sbr.rel (%p111) target = $region16
      $region15: #{tpu_custom_call.1} parent=5 // pred_region
        // Predicated region
        $region17: #{tpu_custom_call.1} parent=15 // pred_check
          %p114 = pneg %p37
        $region18: #{tpu_custom_call.1} parent=15 // pred_check_branch
          %116 = sbr.rel (%p114) target = $region20
        $region19: #{tpu_custom_call.1} parent=15 // pred_region
          %s117 = sand.u32 %s27, 1
          %s118 = scalar_lea.sflag [#allocation3], %s117
          %s119 = sand.u32 %s27, 1
          %s120 = smul.addr %s119, 8
          %s121 = scalar_lea.vmem [#allocation2], %s120
          %s123 = ssub.s32 128, 128
          %124 = vsyncadd %s118, %s123
          %s125 = smul.addr %s17, 128
          %s126 = scalar_lea.hbm %s0, %s125
          %s128 = sshll.u32 %s121, 4
          %s129 = int_to_ptr.vmem [resolvable:$true] %s128
          %131 = dma.hbm_to_vmem [thread:$0]  %s126, 128, %s129, %s118
        $region20: #{tpu_custom_call.1} parent=15 // pred_fallthru
          _
        // Predicated region
        $region21: #{tpu_custom_call.1} parent=15 // pred_check
          %p132 = pneg %p63
        $region22: #{tpu_custom_call.1} parent=15 // pred_check_branch
          %134 = sbr.rel (%p132) target = $region24
        $region23: #{tpu_custom_call.1} parent=15 // pred_region
          %s135 = sand.u32 %s53, 1
          %s136 = scalar_lea.sflag [#allocation6], %s135
          %s137 = sand.u32 %s53, 1
          %s138 = smul.addr %s137, 8
          %s139 = scalar_lea.vmem [#allocation5], %s138
          %s141 = ssub.s32 128, 128
          %142 = vsyncadd %s136, %s141
          %s143 = smul.addr %s17, 128
          %s144 = scalar_lea.hbm %s1, %s143
          %s146 = sshll.u32 %s139, 4
          %s147 = int_to_ptr.vmem [resolvable:$true] %s146
          %149 = dma.hbm_to_vmem [thread:$0]  %s144, 128, %s147, %s136
        $region24: #{tpu_custom_call.1} parent=15 // pred_fallthru
          _
      $region16: #{tpu_custom_call.1} parent=5 // pred_fallthru
        _
      %p150 = scmp.le.s32.totalorder 1, %s17
      %p151 = scmp.lt.s32.totalorder %s17, 3
      %p152 = pnand %p150, %p151
      %p153 = pneg %p152
      // Predicated region
      $region25: #{tpu_custom_call.1} parent=5 // pred_check
        _
      $region26: #{tpu_custom_call.1} parent=5 // pred_check_branch
        %155 = sbr.rel (%p152) target = $region28
      $region27: #{tpu_custom_call.1} parent=5 // pred_region
        %s156 = ssub.s32 %s17, 1
        %s157 = sand.u32 %s30, 1
        %s158 = scalar_lea.sflag [#allocation3], %s157
        %s159 = sand.u32 %s30, 1
        %s160 = smul.addr %s159, 8
        %s161 = scalar_lea.vmem [#allocation2], %s160
        // Predicated region
        $region29: #{tpu_custom_call.1} parent=27 // pred_check
          %p162 = pneg %p43
        $region30: #{tpu_custom_call.1} parent=27 // pred_check_branch
          %164 = sbr.rel (%p162) target = $region32
        $region31: #{tpu_custom_call.1} parent=27 // pred_region
          %165 = dma.done %s158, 128
        $region32: #{tpu_custom_call.1} parent=27 // pred_fallthru
          _
        %s166 = sand.u32 %s56, 1
        %s167 = scalar_lea.sflag [#allocation6], %s166
        %s168 = sand.u32 %s56, 1
        %s169 = smul.addr %s168, 8
        %s170 = scalar_lea.vmem [#allocation5], %s169
        // Predicated region
        $region33: #{tpu_custom_call.1} parent=27 // pred_check
          %p171 = pneg %p69
        $region34: #{tpu_custom_call.1} parent=27 // pred_check_branch
          %173 = sbr.rel (%p171) target = $region36
        $region35: #{tpu_custom_call.1} parent=27 // pred_region
          %174 = dma.done %s167, 128
        $region36: #{tpu_custom_call.1} parent=27 // pred_fallthru
          _
        %s175 = sand.u32 %s30, 1
        %s176 = scalar_lea.sflag [#allocation3], %s175
        %s177 = sand.u32 %s30, 1
        %s178 = smul.addr %s177, 8
        %s179 = scalar_lea.vmem [#allocation2], %s178
        %p180 = pneg %p43
        %p181 = pneg %p40
        %s182 = sand.u32 %s56, 1
        %s183 = scalar_lea.sflag [#allocation6], %s182
        %s184 = sand.u32 %s56, 1
        %s185 = smul.addr %s184, 8
        %s186 = scalar_lea.vmem [#allocation5], %s185
        %p187 = pneg %p69
        %p188 = pneg %p66
        %p189 = pneg %p95
        %p190 = pneg %p92
        %s191 = sand.u32 %s82, 1
        %s192 = scalar_lea.sflag [#allocation4], %s191
        %s193 = sand.u32 %s82, 1
        %s194 = smul.addr %s193, 8
        %s195 = scalar_lea.vmem [#allocation7], %s194
        %v196 = vld [vmem:[%s161] sm:$0xff]
        %v197 = vld [vmem:[%s170] sm:$0xff]
        %v198 = vmul.f32 %v196, 1.5151515
        %v199 = vtanh.pop %v198
        %v200 = vmul.f32 %v197, 1.5151515
        %v201 = vtanh.pop %v200
        %v202 = vsub.f32 %v199, %v201
        %v203 = vand.u32 2147483647, %v202
        %204 = vst [vmem:[%s195] sm:$0xff] %v203
        %s205 = sand.u32 %s82, 1
        %s206 = scalar_lea.sflag [#allocation4], %s205
        %s207 = sand.u32 %s82, 1
        %s208 = smul.addr %s207, 8
        %s209 = scalar_lea.vmem [#allocation7], %s208
        // Predicated region
        $region37: #{tpu_custom_call.1} parent=27 // pred_check
          %p210 = pneg %p92
        $region38: #{tpu_custom_call.1} parent=27 // pred_check_branch
          %212 = sbr.rel (%p210) target = $region40
        $region39: #{tpu_custom_call.1} parent=27 // pred_region
          %s214 = ssub.s32 128, 128
          %215 = vsyncadd %s206, %s214
          %s216 = smul.addr %s22, 128
          %s217 = scalar_lea.hbm %s2, %s216
          %s219 = sshll.u32 %s209, 4
          %s220 = int_to_ptr.vmem [resolvable:$true] %s219
          %222 = dma.vmem_to_hbm [thread:$0]  %s220, 128, %s217, %s206
        $region40: #{tpu_custom_call.1} parent=27 // pred_fallthru
          _
      $region28: #{tpu_custom_call.1} parent=5 // pred_fallthru
        _
      %p223 = scmp.le.s32.totalorder 2, %s17
      // Predicated region
      $region41: #{tpu_custom_call.1} parent=5 // pred_check
        %p224 = pneg %p223
      $region42: #{tpu_custom_call.1} parent=5 // pred_check_branch
        %226 = sbr.rel (%p224) target = $region44
      $region43: #{tpu_custom_call.1} parent=5 // pred_region
        %s227 = ssub.s32 %s17, 2
        // Predicated region
        $region45: #{tpu_custom_call.1} parent=43 // pred_check
          %p228 = pneg %p98
        $region46: #{tpu_custom_call.1} parent=43 // pred_check_branch
          %230 = sbr.rel (%p228) target = $region48
        $region47: #{tpu_custom_call.1} parent=43 // pred_region
          %s231 = sand.u32 %s83, 1
          %s232 = scalar_lea.sflag [#allocation4], %s231
          %s233 = sand.u32 %s83, 1
          %s234 = smul.addr %s233, 8
          %s235 = scalar_lea.vmem [#allocation7], %s234
          %236 = dma.done %s232, 128
        $region48: #{tpu_custom_call.1} parent=43 // pred_fallthru
          _
      $region44: #{tpu_custom_call.1} parent=5 // pred_fallthru
        _
    $region6: #{tpu_custom_call.1} parent=1 // loop_footer
      %s21 = sadd.s32 1, %s17
    $region7: #{tpu_custom_call.1} parent=1 // loop_footer_branch
      %16 = sbr.rel target = $region3
    $region8: #{tpu_custom_call.1} parent=1 // loop_exit
      _
    %237 = vsyncpa [#allocation3], 1
    %s238 = scalar_lea.sflag [#allocation3], 1
    %239 = vsyncpa %s238, 1
    %240 = vsyncpa [#allocation6], 1
    %s241 = scalar_lea.sflag [#allocation6], 1
    %242 = vsyncpa %s241, 1
    %243 = vsyncpa [#allocation4], 1
    %s244 = scalar_lea.sflag [#allocation4], 1
    %245 = vsyncpa %s244, 1

</llo_original>
